<compile_context>
chip_gen: v5e
topology: v5e:2x2
jax: 0.10.0
libtpu: 0.0.40
codegen_flags: <defaults>
</compile_context>

<pallas_src>
import jax
import jax.numpy as jnp
from jax.experimental import pallas as pl
from jax.experimental.pallas import tpu as pltpu


def _copy_kernel(x_ref, o_ref):
    # Pure vld -> vst stream on a sublane/lane-dense tile.
    o_ref[...] = x_ref[...]


_LANES = 128          # vreg lane width
_MAX_TILE_ROWS = 512  # ~256 KiB per f32 block: pipelined, tiny VMEM footprint


def _copy_tiled(a2d: jax.Array) -> jax.Array:
    """Pipelined identity copy of a sublane-dense (rows, 128) slab."""
    rows, lanes = a2d.shape
    tile_r = min(rows, _MAX_TILE_ROWS)
    grid = (pl.cdiv(rows, tile_r),)
    return pl.pallas_call(
        _copy_kernel,
        out_shape=jax.ShapeDtypeStruct((rows, lanes), a2d.dtype),
        grid=grid,
        in_specs=[pl.BlockSpec((tile_r, lanes), lambda i: (i, 0))],
        out_specs=pl.BlockSpec((tile_r, lanes), lambda i: (i, 0)),
        compiler_params=pltpu.CompilerParams(
            # Independent row-tiles -> shardable across v7x's two TensorCores.
            dimension_semantics=("parallel",),
        ),
    )(a2d)


def _copy_whole(a2d: jax.Array) -> jax.Array:
    """Ragged fallback: whole-array (1, N) copy, no grid / no index maps."""
    return pl.pallas_call(
        _copy_kernel,
        out_shape=jax.ShapeDtypeStruct(a2d.shape, a2d.dtype),
    )(a2d)


def view_size_dim_led_by_expanded_ones(a: jax.Array) -> jax.Array:
    """Equivalent of torch: a.view(1, 1, 1, a.size(0)) for a 1-D input `a`.

    NOTE: the zero-cost JAX equivalent of the torch .view is simply
    jnp.reshape(a, (1, 1, 1, n)) — the Pallas kernel here only exists to
    exercise the op on-device, and is laid out/tiled so that copy runs at
    HBM roofline instead of being sublane-padded overhead.
    """
    assert a.ndim == 1, "module expects a 1-D input"
    n = a.shape[0]

    if n > 0 and n % _LANES == 0:
        # Sublane-dense slab: fills all 8 sublanes of each (8, 128) tile.
        a2d = jnp.reshape(a, (n // _LANES, _LANES))
        copied = _copy_tiled(a2d)
    else:
        # Ragged fallback: lane-dense (1, N) single-block copy.
        a2d = jnp.reshape(a, (1, max(n, 1))) if n > 0 else jnp.reshape(a, (1, 0))
        copied = _copy_whole(a2d) if n > 0 else a2d

    # Free (metadata-only) reshape to the target 4-D shape (1, 1, 1, N),
    # done outside the kernel.
    return jnp.reshape(copied, (1, 1, 1, n))


if __name__ == "__main__":
    key = jax.random.PRNGKey(0)
    key_a, key_b = jax.random.split(key)

    # Input consistent with the annotated signature [-1]: a small 1-D tensor.
    n = 128
    a = jax.random.normal(key_a, (n,), dtype=jnp.float32)

    out = jax.block_until_ready(view_size_dim_led_by_expanded_ones(a))
    ref = jnp.reshape(a, (1, 1, 1, n))
    assert out.shape == (1, 1, 1, n), out.shape
    assert out.dtype == jnp.float32, out.dtype
    assert jnp.array_equal(out, ref), "mismatch vs. reference view/reshape"

    # Also exercise the ragged fallback path once (N not a multiple of 128).
    m = 40
    b = jax.random.normal(key_b, (m,), dtype=jnp.float32)
    out_b = jax.block_until_ready(view_size_dim_led_by_expanded_ones(b))
    assert out_b.shape == (1, 1, 1, m), out_b.shape
    assert jnp.array_equal(out_b, jnp.reshape(b, (1, 1, 1, m))), "ragged mismatch"

    print("KERNEL_OK")
</pallas_src>

<mosaic_0001>
module attributes {stable_mosaic.version = 11 : i64} {
  func.func @_copy_kernel(%arg0: i32, %arg1: memref<1x128xf32, #tpu.memory_space<vmem>>, %arg2: memref<1x128xf32, #tpu.memory_space<vmem>>) attributes {dimension_semantics = [#tpu.dimension_semantics<parallel>], iteration_bounds = array<i64: 1>, scalar_prefetch = 0 : i64, scratch_operands = 0 : i64, tpu.core_type = #tpu.core_type<tc>, window_params = [{transform_indices = @transform_0, window_bounds = array<i64: 1, 128>}, {transform_indices = @transform_1, window_bounds = array<i64: 1, 128>}]} {
    %c0 = arith.constant 0 : index
    %c0_0 = arith.constant 0 : index
    %0 = vector.load %arg1[%c0, %c0_0] : memref<1x128xf32, #tpu.memory_space<vmem>>, vector<1x128xf32>
    %c0_1 = arith.constant 0 : index
    %c0_2 = arith.constant 0 : index
    %1 = vector.load %arg2[%c0_1, %c0_2] : memref<1x128xf32, #tpu.memory_space<vmem>>, vector<1x128xf32>
    tpu.vector_store %arg2[%c0_1, %c0_2], %0 {strides = array<i32>} : memref<1x128xf32, #tpu.memory_space<vmem>>, vector<1x128xf32>,
    return
  }
  func.func @transform_0(%arg0: i32) -> (i32, i32) {
    %c0_i32 = arith.constant 0 : i32
    %c0_i32_0 = arith.constant 0 : i32
    return %arg0, %c0_i32 : i32, i32
  }
  func.func @transform_1(%arg0: i32) -> (i32, i32) {
    %c0_i32 = arith.constant 0 : i32
    %c0_i32_0 = arith.constant 0 : i32
    return %arg0, %c0_i32 : i32, i32
  }
}

</mosaic_0001>

<llo_original>
// kernel: tpu_custom_call.1
$region0: #{tpu_custom_call.1}
  #allocation0 [shape = 'u32[]', space=smem, size = 0x4, offset = 0x4, fixed_abs, tag = 'smem constant byte address 0x4 - core index']
  #allocation1 [shape = 'u32[72,128]{1,0:T(1,128)}', space=vmem, size = 0x9000, scoped, tag = 'internal scratch']
  %s0 = inlined_call_operand.hbm [shape: f32[1,128], index: 0, kind: input, shape index: {}]
  %s1 = inlined_call_operand.hbm [shape: f32[1,128], index: 1, kind: output, shape index: {}]
  %s2 = sld [smem:[#allocation0]]
  $region18: #{tpu_custom_call.1} parent=0
    _
  %s4 = ssub.s32 1, %s2
  %s5 = scalar_select 0, %s4, %s2
  $region1: #{tpu_custom_call.1} parent=0
    #allocation2 [shape = 'u8[512]{0}', space=vmem, size = 0x400, scoped, tag = 'input window, operand 0, single buffered']
    #allocation3 [shape = 's32[1]{0}', space=sflag, size = 0x4, scoped, tag = 'scoped memory for tpu_custom_call.1']
    #allocation4 [shape = 's32[1]{0}', space=sflag, size = 0x4, scoped, tag = 'scoped memory for tpu_custom_call.1']
    #allocation5 [shape = 'u8[512]{0}', space=vmem, size = 0x400, scoped, tag = 'output window, operand 0, single buffered']
    %6 = vsyncpa [#allocation3], 0
    %7 = vsyncpa [#allocation4], 0
    // Predicated region
    $region2: #{tpu_custom_call.1} parent=1 // pred_check
      _
    $region3: #{tpu_custom_call.1} parent=1 // pred_check_branch
      %9 = sbr.rel (0) target = $region5
    $region4: #{tpu_custom_call.1} parent=1 // pred_region
      %11 = vsyncadd [#allocation3], 0
      %s13 = sshll.u32 %s0, 4
      %s14 = int_to_ptr.hbm [resolvable:$true] %s13
      %s15 = sshll.u32 [#allocation2], 4
      %s16 = int_to_ptr.vmem [resolvable:$true] %s15
      %18 = dma.hbm_to_vmem [thread:$0]  %s14, 16, %s16, [#allocation3]
    $region5: #{tpu_custom_call.1} parent=1 // pred_fallthru
      _
    // Predicated region
    $region6: #{tpu_custom_call.1} parent=1 // pred_check
      _
    $region7: #{tpu_custom_call.1} parent=1 // pred_check_branch
      %20 = sbr.rel (0) target = $region9
    $region8: #{tpu_custom_call.1} parent=1 // pred_region
      %22 = dma.done [#allocation3], 16
    $region9: #{tpu_custom_call.1} parent=1 // pred_fallthru
      _
    %v23 = vld [vmem:[#allocation2] sm:$0x1]
    %24 = vst [vmem:[#allocation5] sm:$0x1] %v23
    // Predicated region
    $region10: #{tpu_custom_call.1} parent=1 // pred_check
      _
    $region11: #{tpu_custom_call.1} parent=1 // pred_check_branch
      %26 = sbr.rel (0) target = $region13
    $region12: #{tpu_custom_call.1} parent=1 // pred_region
      %28 = vsyncadd [#allocation4], 0
      %s30 = sshll.u32 [#allocation5], 4
      %s31 = int_to_ptr.vmem [resolvable:$true] %s30
      %s32 = sshll.u32 %s1, 4
      %s33 = int_to_ptr.hbm [resolvable:$true] %s32
      %35 = dma.vmem_to_hbm [thread:$0]  %s31, 16, %s33, [#allocation4]
    $region13: #{tpu_custom_call.1} parent=1 // pred_fallthru
      _
    // Predicated region
    $region14: #{tpu_custom_call.1} parent=1 // pred_check
      _
    $region15: #{tpu_custom_call.1} parent=1 // pred_check_branch
      %37 = sbr.rel (0) target = $region17
    $region16: #{tpu_custom_call.1} parent=1 // pred_region
      %39 = dma.done [#allocation4], 16
    $region17: #{tpu_custom_call.1} parent=1 // pred_fallthru
      _
    %40 = vsyncpa [#allocation3], 1
    %41 = vsyncpa [#allocation4], 1

</llo_original>
